<compile_context>
chip_gen: v7x
topology: tpu7x:2x2x1
jax: 0.10.0
libtpu: 0.0.40
codegen_flags: <defaults>
</compile_context>

<pallas_src>
import jax
import jax.numpy as jnp
from jax.experimental import pallas as pl
from jax.experimental.pallas import tpu as pltpu

IN_F = 28 * 28   # 784 (full lane dim for x / W1 -- no K padding)
HID = 100
H_PAD = 128      # hidden padded to one lane-width
OUT = 10
N_PAD = 128      # output padded to one lane-width (sliced to 10 in wrapper)


def _round_up(n, m):
    return ((n + m - 1) // m) * m


def mlp_kernel(x_ref, w1_ref, b1_ref, w2_ref, b2_ref, o_ref):
    # x_ref:  (TB, 784) bf16    w1_ref: (784, 128) bf16   b1_ref: (1, 128) f32
    # w2_ref: (128, 128) bf16   b2_ref: (1, 128) f32      o_ref:  (TB, 128) f32
    h = jnp.dot(x_ref[...], w1_ref[...], preferred_element_type=jnp.float32)
    h = jnp.maximum(h + b1_ref[...], 0.0)                  # f32 bias + ReLU (VPU)
    y = jnp.dot(h.astype(jnp.bfloat16), w2_ref[...],
                preferred_element_type=jnp.float32)
    o_ref[...] = (y + b2_ref[...]).astype(o_ref.dtype)     # f32 lane-dense store


def prepare_params(w1, b1, w2, b2):
    """One-time packing of PyTorch-layout params (call at init, not per step).

    W1 (100,784) -> (784,128) bf16 (transposed, hidden zero-padded to 128)
    W2 (10,100)  -> (128,128) bf16 (transposed, zero-padded)
    biases stay f32, padded to one lane-width.  Zero padding is exact.
    """
    w1p = jnp.zeros((IN_F, H_PAD), jnp.float32).at[:, :HID].set(w1.T)
    b1p = jnp.zeros((1, H_PAD), jnp.float32).at[0, :HID].set(b1)
    w2p = jnp.zeros((H_PAD, N_PAD), jnp.float32).at[:HID, :OUT].set(w2.T)
    b2p = jnp.zeros((1, N_PAD), jnp.float32).at[0, :OUT].set(b2)
    return (w1p.astype(jnp.bfloat16), b1p,
            w2p.astype(jnp.bfloat16), b2p)


def neural_numbers_forward(x, params, *, block_batch=2048):
    """x: (B, 1, 28, 28) NCHW (any float dtype).  params: prepare_params output.
    Returns (B, 10) float32 logits."""
    w1p, b1p, w2p, b2p = params
    B = x.shape[0]
    x_flat = x.reshape(B, IN_F)                     # nn.Flatten (metadata only)
    # bf16 stream for the MXU; feed bf16 end-to-end upstream to avoid this cast.
    x_in = x_flat if x_flat.dtype == jnp.bfloat16 else x_flat.astype(jnp.bfloat16)

    # Batch tile: multiple of 8 (sublane), capped at block_batch.
    tb = min(block_batch, _round_up(B, 8))
    grid = (pl.cdiv(B, tb),)                        # ragged last tile is masked

    flops = 2 * B * (IN_F * HID + HID * OUT)
    bytes_accessed = (B * IN_F * 2                                    # x (bf16)
                      + IN_F * H_PAD * 2 + H_PAD * N_PAD * 2          # W1, W2
                      + (H_PAD + N_PAD) * 4                           # biases
                      + B * N_PAD * 4)                                # out (f32)

    out = pl.pallas_call(
        mlp_kernel,
        out_shape=jax.ShapeDtypeStruct((B, N_PAD), jnp.float32),
        grid=grid,
        in_specs=[
            pl.BlockSpec((tb, IN_F), lambda i: (i, 0)),       # x: tiled over batch
            pl.BlockSpec((IN_F, H_PAD), lambda i: (0, 0)),    # W1: VMEM-resident
            pl.BlockSpec((1, H_PAD), lambda i: (0, 0)),       # b1: VMEM-resident
            pl.BlockSpec((H_PAD, N_PAD), lambda i: (0, 0)),   # W2: VMEM-resident
            pl.BlockSpec((1, N_PAD), lambda i: (0, 0)),       # b2: VMEM-resident
        ],
        out_specs=pl.BlockSpec((tb, N_PAD), lambda i: (i, 0)),
        compiler_params=pltpu.CompilerParams(
            dimension_semantics=("parallel",),
            vmem_limit_bytes=32 * 1024 * 1024),               # v5e default is 16 MiB
        cost_estimate=pl.CostEstimate(
            flops=flops, transcendentals=0, bytes_accessed=bytes_accessed),
    )(x_in, w1p, b1p, w2p, b2p)

    return out[:, :OUT]


def init_params(key):
    """Deterministic init matching nn.Linear default U(-1/sqrt(fan_in), +)."""
    k1, k2, k3, k4 = jax.random.split(key, 4)
    bound1 = 1.0 / jnp.sqrt(IN_F)
    bound2 = 1.0 / jnp.sqrt(HID)
    w1 = jax.random.uniform(k1, (HID, IN_F), jnp.float32, -bound1, bound1)
    b1 = jax.random.uniform(k2, (HID,), jnp.float32, -bound1, bound1)
    w2 = jax.random.uniform(k3, (OUT, HID), jnp.float32, -bound2, bound2)
    b2 = jax.random.uniform(k4, (OUT,), jnp.float32, -bound2, bound2)
    return w1, b1, w2, b2


if __name__ == "__main__":
    key = jax.random.PRNGKey(0)
    k_x, k_p = jax.random.split(key)

    # Small MNIST-like batch: (batch=2, channels=1, 28, 28), NCHW like PyTorch.
    x = jax.random.normal(k_x, (2, 1, 28, 28), dtype=jnp.float32)
    w1, b1, w2, b2 = init_params(k_p)

    params = prepare_params(w1, b1, w2, b2)          # one-time packing
    logits = neural_numbers_forward(x, params)
    jax.block_until_ready(logits)

    # Sanity check against plain-JAX f32 reference of the same math.
    # bf16 MXU inputs introduce ~1e-2 relative error (documented trade-off).
    x_flat = x.reshape(x.shape[0], -1)
    ref = jnp.maximum(x_flat @ w1.T + b1, 0.0) @ w2.T + b2
    assert logits.shape == (2, 10)
    assert bool(jnp.allclose(logits, ref, atol=5e-2, rtol=5e-2))

    print("KERNEL_OK")
</pallas_src>

<mosaic_0001>
module attributes {stable_mosaic.version = 11 : i64} {
  func.func @mlp_kernel(%arg0: i32, %arg1: memref<8x784xbf16, #tpu.memory_space<vmem>>, %arg2: memref<784x128xbf16, #tpu.memory_space<vmem>>, %arg3: memref<1x128xf32, #tpu.memory_space<vmem>>, %arg4: memref<128x128xbf16, #tpu.memory_space<vmem>>, %arg5: memref<1x128xf32, #tpu.memory_space<vmem>>, %arg6: memref<8x128xf32, #tpu.memory_space<vmem>>) attributes {dimension_semantics = [#tpu.dimension_semantics<parallel>], iteration_bounds = array<i64: 1>, scalar_prefetch = 0 : i64, scratch_operands = 0 : i64, tpu.core_type = #tpu.core_type<tc>, window_params = [{transform_indices = @transform_0, window_bounds = array<i64: 8, 784>}, {pipeline_mode = #tpu.pipeline_mode<synchronous>, transform_indices = @transform_1, window_bounds = array<i64: 784, 128>}, {pipeline_mode = #tpu.pipeline_mode<synchronous>, transform_indices = @transform_2, window_bounds = array<i64: 1, 128>}, {pipeline_mode = #tpu.pipeline_mode<synchronous>, transform_indices = @transform_3, window_bounds = array<i64: 128, 128>}, {pipeline_mode = #tpu.pipeline_mode<synchronous>, transform_indices = @transform_4, window_bounds = array<i64: 1, 128>}, {transform_indices = @transform_5, window_bounds = array<i64: 8, 128>}]} {
    %c0 = arith.constant 0 : index
    %c0_0 = arith.constant 0 : index
    %0 = vector.load %arg1[%c0, %c0_0] : memref<8x784xbf16, #tpu.memory_space<vmem>>, vector<8x784xbf16>
    %c0_1 = arith.constant 0 : index
    %c0_2 = arith.constant 0 : index
    %1 = vector.load %arg2[%c0_1, %c0_2] : memref<784x128xbf16, #tpu.memory_space<vmem>>, vector<784x128xbf16>
    %cst = arith.constant dense<0.000000e+00> : vector<8x128xf32>
    %2 = tpu.matmul %0, %1, %cst {dimension_numbers = #tpu.dot_dimension_numbers<[1], [0], [0], [1], [0, 0, 1, 1], [], []>} : vector<8x784xbf16>, vector<784x128xbf16>, vector<8x128xf32> -> vector<8x128xf32>
    %c0_3 = arith.constant 0 : index
    %c0_4 = arith.constant 0 : index
    %3 = vector.load %arg3[%c0_3, %c0_4] : memref<1x128xf32, #tpu.memory_space<vmem>>, vector<1x128xf32>
    %4 = vector.broadcast %3 : vector<1x128xf32> to vector<8x128xf32>
    %5 = arith.addf %2, %4 : vector<8x128xf32>
    %cst_5 = arith.constant 0.000000e+00 : f32
    %6 = vector.broadcast %cst_5 : f32 to vector<8x128xf32>
    %7 = arith.maximumf %5, %6 : vector<8x128xf32>
    %8 = arith.truncf %7 : vector<8x128xf32> to vector<8x128xbf16>
    %c0_6 = arith.constant 0 : index
    %c0_7 = arith.constant 0 : index
    %9 = vector.load %arg4[%c0_6, %c0_7] : memref<128x128xbf16, #tpu.memory_space<vmem>>, vector<128x128xbf16>
    %cst_8 = arith.constant dense<0.000000e+00> : vector<8x128xf32>
    %10 = tpu.matmul %8, %9, %cst_8 {dimension_numbers = #tpu.dot_dimension_numbers<[1], [0], [0], [1], [0, 0, 1, 1], [], []>} : vector<8x128xbf16>, vector<128x128xbf16>, vector<8x128xf32> -> vector<8x128xf32>
    %c0_9 = arith.constant 0 : index
    %c0_10 = arith.constant 0 : index
    %11 = vector.load %arg5[%c0_9, %c0_10] : memref<1x128xf32, #tpu.memory_space<vmem>>, vector<1x128xf32>
    %12 = vector.broadcast %11 : vector<1x128xf32> to vector<8x128xf32>
    %13 = arith.addf %10, %12 : vector<8x128xf32>
    %c0_11 = arith.constant 0 : index
    %c0_12 = arith.constant 0 : index
    %14 = vector.load %arg6[%c0_11, %c0_12] : memref<8x128xf32, #tpu.memory_space<vmem>>, vector<8x128xf32>
    tpu.vector_store %arg6[%c0_11, %c0_12], %13 {strides = array<i32>} : memref<8x128xf32, #tpu.memory_space<vmem>>, vector<8x128xf32>,
    return
  }
  func.func @transform_0(%arg0: i32) -> (i32, i32) {
    %c0_i32 = arith.constant 0 : i32
    %c0_i32_0 = arith.constant 0 : i32
    return %arg0, %c0_i32 : i32, i32
  }
  func.func @transform_1(%arg0: i32) -> (i32, i32) {
    %c0_i32 = arith.constant 0 : i32
    %c0_i32_0 = arith.constant 0 : i32
    %c0_i32_1 = arith.constant 0 : i32
    return %c0_i32, %c0_i32_0 : i32, i32
  }
  func.func @transform_2(%arg0: i32) -> (i32, i32) {
    %c0_i32 = arith.constant 0 : i32
    %c0_i32_0 = arith.constant 0 : i32
    %c0_i32_1 = arith.constant 0 : i32
    return %c0_i32, %c0_i32_0 : i32, i32
  }
  func.func @transform_3(%arg0: i32) -> (i32, i32) {
    %c0_i32 = arith.constant 0 : i32
    %c0_i32_0 = arith.constant 0 : i32
    %c0_i32_1 = arith.constant 0 : i32
    return %c0_i32, %c0_i32_0 : i32, i32
  }
  func.func @transform_4(%arg0: i32) -> (i32, i32) {
    %c0_i32 = arith.constant 0 : i32
    %c0_i32_0 = arith.constant 0 : i32
    %c0_i32_1 = arith.constant 0 : i32
    return %c0_i32, %c0_i32_0 : i32, i32
  }
  func.func @transform_5(%arg0: i32) -> (i32, i32) {
    %c0_i32 = arith.constant 0 : i32
    %c0_i32_0 = arith.constant 0 : i32
    return %arg0, %c0_i32 : i32, i32
  }
}

</mosaic_0001>

<llo_original>
// kernel: tpu_custom_call.1
$region0: #{tpu_custom_call.1}
  #allocation0 [shape = 'u32[]', space=smem, size = 0x4, offset = 0x4, fixed_abs, tag = 'smem constant byte address 0x4 - core index']
  #allocation1 [shape = 'u32[144,128]{1,0:T(1,128)}', space=vmem, size = 0x12000, scoped, tag = 'internal scratch']
  %s0 = inlined_call_operand.hbm [shape: bf16[2,784], index: 0, kind: input, shape index: {}]
  %s1 = inlined_call_operand.hbm [shape: bf16[784,128], index: 1, kind: input, shape index: {}]
  %s2 = inlined_call_operand.vmem [shape: f32[1,128], index: 2, kind: input, shape index: {}]
  %s3 = inlined_call_operand.hbm [shape: bf16[128,128], index: 3, kind: input, shape index: {}]
  %s4 = inlined_call_operand.vmem [shape: f32[1,128], index: 4, kind: input, shape index: {}]
  %s5 = inlined_call_operand.hbm [shape: f32[2,128], index: 5, kind: output, shape index: {}]
  %s6 = sld [smem:[#allocation0]]
  $region42: #{tpu_custom_call.1} parent=0
    _
  %s8 = ssub.s32 1, %s6
  %s9 = scalar_select 0, %s8, %s6
  $region1: #{tpu_custom_call.1} parent=0
    #allocation2 [shape = 'u8[14336]{0}', space=vmem, size = 0x3800, scoped, tag = 'input window, operand 0, single buffered']
    #allocation3 [shape = 's32[1]{0}', space=sflag, size = 0x4, scoped, tag = 'scoped memory for tpu_custom_call.1']
    #allocation4 [shape = 's32[1]{0}', space=sflag, size = 0x4, scoped, tag = 'scoped memory for tpu_custom_call.1']
    #allocation5 [shape = 'u8[200704]{0}', space=vmem, size = 0x31000, scoped, tag = 'input window, operand 1, single buffered']
    #allocation6 [shape = 's32[1]{0}', space=sflag, size = 0x4, scoped, tag = 'scoped memory for tpu_custom_call.1']
    #allocation7 [shape = 'u8[32768]{0}', space=vmem, size = 0x8000, scoped, tag = 'input window, operand 3, single buffered']
    #allocation8 [shape = 'u8[4096]{0}', space=vmem, size = 0x1000, scoped, tag = 'output window, operand 0, single buffered']
    %10 = vsyncpa [#allocation3], 0
    %11 = vsyncpa [#allocation6], 0
    %12 = vsyncpa [#allocation4], 0
    // Predicated region
    $region2: #{tpu_custom_call.1} parent=1 // pred_check
      _
    $region3: #{tpu_custom_call.1} parent=1 // pred_check_branch
      %14 = sbr.rel (0) target = $region5
    $region4: #{tpu_custom_call.1} parent=1 // pred_region
      %s16 = ssub.s32 448, 112
      %17 = vsyncadd [#allocation3], %s16
      %s18 = sshll.u32 [#allocation2], 4
      %s19 = int_to_ptr.vmem [resolvable:$true] %s18
      %24 = dma.hbm_to_vmem [thread:$0]  %s0, 112, %s19, [#allocation3], 112, 112, 7
    $region5: #{tpu_custom_call.1} parent=1 // pred_fallthru
      _
    // Predicated region
    $region6: #{tpu_custom_call.1} parent=1 // pred_check
      _
    $region7: #{tpu_custom_call.1} parent=1 // pred_check_branch
      %26 = sbr.rel (0) target = $region9
    $region8: #{tpu_custom_call.1} parent=1 // pred_region
      %s28 = ssub.s32 6272, 6272
      %29 = vsyncadd [#allocation6], %s28
      %s30 = sshll.u32 [#allocation5], 4
      %s31 = int_to_ptr.vmem [resolvable:$true] %s30
      %36 = dma.hbm_to_vmem [thread:$0]  %s1, 6272, %s31, [#allocation6], 64, 64, 4
    $region9: #{tpu_custom_call.1} parent=1 // pred_fallthru
      _
    // Predicated region
    $region10: #{tpu_custom_call.1} parent=1 // pred_check
      _
    $region11: #{tpu_custom_call.1} parent=1 // pred_check_branch
      %38 = sbr.rel (0) target = $region13
    $region12: #{tpu_custom_call.1} parent=1 // pred_region
      _
    $region13: #{tpu_custom_call.1} parent=1 // pred_fallthru
      _
    // Predicated region
    $region14: #{tpu_custom_call.1} parent=1 // pred_check
      _
    $region15: #{tpu_custom_call.1} parent=1 // pred_check_branch
      %40 = sbr.rel (0) target = $region17
    $region16: #{tpu_custom_call.1} parent=1 // pred_region
      %s42 = ssub.s32 1024, 1024
      %43 = vsyncadd [#allocation6], %s42
      %s44 = sshll.u32 [#allocation7], 4
      %s45 = int_to_ptr.vmem [resolvable:$true] %s44
      %50 = dma.hbm_to_vmem [thread:$0]  %s3, 1024, %s45, [#allocation6], 64, 64, 4
    $region17: #{tpu_custom_call.1} parent=1 // pred_fallthru
      _
    // Predicated region
    $region18: #{tpu_custom_call.1} parent=1 // pred_check
      _
    $region19: #{tpu_custom_call.1} parent=1 // pred_check_branch
      %52 = sbr.rel (0) target = $region21
    $region20: #{tpu_custom_call.1} parent=1 // pred_region
      _
    $region21: #{tpu_custom_call.1} parent=1 // pred_fallthru
      _
    // Predicated region
    $region22: #{tpu_custom_call.1} parent=1 // pred_check
      _
    $region23: #{tpu_custom_call.1} parent=1 // pred_check_branch
      %54 = sbr.rel (0) target = $region25
    $region24: #{tpu_custom_call.1} parent=1 // pred_region
      %55 = dma.done [#allocation3], 448
    $region25: #{tpu_custom_call.1} parent=1 // pred_fallthru
      _
    // Predicated region
    $region26: #{tpu_custom_call.1} parent=1 // pred_check
      _
    $region27: #{tpu_custom_call.1} parent=1 // pred_check_branch
      %57 = sbr.rel (0) target = $region29
    $region28: #{tpu_custom_call.1} parent=1 // pred_region
      %58 = dma.done [#allocation6], 6272
    $region29: #{tpu_custom_call.1} parent=1 // pred_fallthru
      _
    // Predicated region
    $region30: #{tpu_custom_call.1} parent=1 // pred_check
      _
    $region31: #{tpu_custom_call.1} parent=1 // pred_check_branch
      %60 = sbr.rel (0) target = $region33
    $region32: #{tpu_custom_call.1} parent=1 // pred_region
      %61 = dma.done [#allocation6], 1024
    $region33: #{tpu_custom_call.1} parent=1 // pred_fallthru
      _
    %v63 = vld [vmem:[#allocation2] sm:$0x7f]
    %v64 = vld [vmem:[#allocation2 + $0x7] sm:$0x7f]
    %v65 = vld [vmem:[#allocation2 + $0xe] sm:$0x7f]
    %v66 = vld [vmem:[#allocation2 + $0x15] sm:$0x7f]
    %v67 = vld [vmem:[#allocation5] sm:$0xf]
    %v68 = vld [vmem:[#allocation5 + $0x4] sm:$0xf]
    %v69 = vld [vmem:[#allocation5 + $0x8] sm:$0xf]
    %v70 = vld [vmem:[#allocation5 + $0xc] sm:$0xf]
    %v71 = vld [vmem:[#allocation5 + $0x10] sm:$0xf]
    %v72 = vld [vmem:[#allocation5 + $0x14] sm:$0xf]
    %v73 = vld [vmem:[#allocation5 + $0x18] sm:$0xf]
    %v74 = vld [vmem:[#allocation5 + $0x1c] sm:$0xf]
    %v75 = vld [vmem:[#allocation5 + $0x20] sm:$0xf]
    %v76 = vld [vmem:[#allocation5 + $0x24] sm:$0xf]
    %v77 = vld [vmem:[#allocation5 + $0x28] sm:$0xf]
    %v78 = vld [vmem:[#allocation5 + $0x2c] sm:$0xf]
    %v79 = vld [vmem:[#allocation5 + $0x30] sm:$0xf]
    %v80 = vld [vmem:[#allocation5 + $0x34] sm:$0xf]
    %v81 = vld [vmem:[#allocation5 + $0x38] sm:$0xf]
    %v82 = vld [vmem:[#allocation5 + $0x3c] sm:$0xf]
    %v83 = vld [vmem:[#allocation5 + $0x40] sm:$0xf]
    %v84 = vld [vmem:[#allocation5 + $0x44] sm:$0xf]
    %v85 = vld [vmem:[#allocation5 + $0x48] sm:$0xf]
    %v86 = vld [vmem:[#allocation5 + $0x4c] sm:$0xf]
    %v87 = vld [vmem:[#allocation5 + $0x50] sm:$0xf]
    %v88 = vld [vmem:[#allocation5 + $0x54] sm:$0xf]
    %v89 = vld [vmem:[#allocation5 + $0x58] sm:$0xf]
    %v90 = vld [vmem:[#allocation5 + $0x5c] sm:$0xf]
    %v91 = vld [vmem:[#allocation5 + $0x60] sm:$0xf]
    %v92 = vld [vmem:[#allocation5 + $0x64] sm:$0xf]
    %v93 = vld [vmem:[#allocation5 + $0x68] sm:$0xf]
    %v94 = vld [vmem:[#allocation5 + $0x6c] sm:$0xf]
    %v95 = vld [vmem:[#allocation5 + $0x70] sm:$0xf]
    %v96 = vld [vmem:[#allocation5 + $0x74] sm:$0xf]
    %v97 = vld [vmem:[#allocation5 + $0x78] sm:$0xf]
    %v98 = vld [vmem:[#allocation5 + $0x7c] sm:$0xf]
    %v99 = vld [vmem:[#allocation5 + $0x80] sm:$0xf]
    %v100 = vld [vmem:[#allocation5 + $0x84] sm:$0xf]
    %v101 = vld [vmem:[#allocation5 + $0x88] sm:$0xf]
    %v102 = vld [vmem:[#allocation5 + $0x8c] sm:$0xf]
    %v103 = vld [vmem:[#allocation5 + $0x90] sm:$0xf]
    %v104 = vld [vmem:[#allocation5 + $0x94] sm:$0xf]
    %v105 = vld [vmem:[#allocation5 + $0x98] sm:$0xf]
    %v106 = vld [vmem:[#allocation5 + $0x9c] sm:$0xf]
    %v107 = vld [vmem:[#allocation5 + $0xa0] sm:$0xf]
    %v108 = vld [vmem:[#allocation5 + $0xa4] sm:$0xf]
    %v109 = vld [vmem:[#allocation5 + $0xa8] sm:$0xf]
    %v110 = vld [vmem:[#allocation5 + $0xac] sm:$0xf]
    %v111 = vld [vmem:[#allocation5 + $0xb0] sm:$0xf]
    %v112 = vld [vmem:[#allocation5 + $0xb4] sm:$0xf]
    %v113 = vld [vmem:[#allocation5 + $0xb8] sm:$0xf]
    %v114 = vld [vmem:[#allocation5 + $0xbc] sm:$0xf]
    %v115 = vld [vmem:[#allocation5 + $0xc0] sm:$0xf]
    %v116 = vld [vmem:[#allocation5 + $0xc4] sm:$0xf]
    %v117 = vld [vmem:[#allocation5 + $0xc8] sm:$0xf]
    %v118 = vld [vmem:[#allocation5 + $0xcc] sm:$0xf]
    %v119 = vld [vmem:[#allocation5 + $0xd0] sm:$0xf]
    %v120 = vld [vmem:[#allocation5 + $0xd4] sm:$0xf]
    %v121 = vld [vmem:[#allocation5 + $0xd8] sm:$0xf]
    %v122 = vld [vmem:[#allocation5 + $0xdc] sm:$0xf]
    %v123 = vld [vmem:[#allocation5 + $0xe0] sm:$0xf]
    %v124 = vld [vmem:[#allocation5 + $0xe4] sm:$0xf]
    %v125 = vld [vmem:[#allocation5 + $0xe8] sm:$0xf]
    %v126 = vld [vmem:[#allocation5 + $0xec] sm:$0xf]
    %v127 = vld [vmem:[#allocation5 + $0xf0] sm:$0xf]
    %v128 = vld [vmem:[#allocation5 + $0xf4] sm:$0xf]
    %v129 = vld [vmem:[#allocation5 + $0xf8] sm:$0xf]
    %v130 = vld [vmem:[#allocation5 + $0xfc] sm:$0xf]
    %v131 = vld [vmem:[#allocation5 + $0x100] sm:$0xf]
    %v132 = vld [vmem:[#allocation5 + $0x104] sm:$0xf]
    %v133 = vld [vmem:[#allocation5 + $0x108] sm:$0xf]
    %v134 = vld [vmem:[#allocation5 + $0x10c] sm:$0xf]
    %v135 = vld [vmem:[#allocation5 + $0x110] sm:$0xf]
    %v136 = vld [vmem:[#allocation5 + $0x114] sm:$0xf]
    %v137 = vld [vmem:[#allocation5 + $0x118] sm:$0xf]
    %v138 = vld [vmem:[#allocation5 + $0x11c] sm:$0xf]
    %v139 = vld [vmem:[#allocation5 + $0x120] sm:$0xf]
    %v140 = vld [vmem:[#allocation5 + $0x124] sm:$0xf]
    %v141 = vld [vmem:[#allocation5 + $0x128] sm:$0xf]
    %v142 = vld [vmem:[#allocation5 + $0x12c] sm:$0xf]
    %v143 = vld [vmem:[#allocation5 + $0x130] sm:$0xf]
    %v144 = vld [vmem:[#allocation5 + $0x134] sm:$0xf]
    %v145 = vld [vmem:[#allocation5 + $0x138] sm:$0xf]
    %v146 = vld [vmem:[#allocation5 + $0x13c] sm:$0xf]
    %v147 = vld [vmem:[#allocation5 + $0x140] sm:$0xf]
    %v148 = vld [vmem:[#allocation5 + $0x144] sm:$0xf]
    %v149 = vld [vmem:[#allocation5 + $0x148] sm:$0xf]
    %v150 = vld [vmem:[#allocation5 + $0x14c] sm:$0xf]
    %v151 = vld [vmem:[#allocation5 + $0x150] sm:$0xf]
    %v152 = vld [vmem:[#allocation5 + $0x154] sm:$0xf]
    %v153 = vld [vmem:[#allocation5 + $0x158] sm:$0xf]
    %v154 = vld [vmem:[#allocation5 + $0x15c] sm:$0xf]
    %v155 = vld [vmem:[#allocation5 + $0x160] sm:$0xf]
    %v156 = vld [vmem:[#allocation5 + $0x164] sm:$0xf]
    %v157 = vld [vmem:[#allocation5 + $0x168] sm:$0xf]
    %v158 = vld [vmem:[#allocation5 + $0x16c] sm:$0xf]
    %v159 = vld [vmem:[#allocation5 + $0x170] sm:$0xf]
    %v160 = vld [vmem:[#allocation5 + $0x174] sm:$0xf]
    %v161 = vld [vmem:[#allocation5 + $0x178] sm:$0xf]
    %v162 = vld [vmem:[#allocation5 + $0x17c] sm:$0xf]
    %v163 = vld [vmem:[#allocation5 + $0x180] sm:$0xf]
    %v164 = vld [vmem:[#allocation5 + $0x184] sm:$0xf]
    %v165 = vld [vmem:[%s2] sm:$0x1]
    %v167 = vlaneseq
    %v168 = vshrl.u32 %v167, 7
    %v169 = vsub.s32 0, %v168
    %v170 = vrot.slane %v165, %v169
    %v176 = vcombine.low %v63, %v64
    %v177 = vcombine.high %v63, %v64
    %v178 = vcombine.low %v65, %v66
    %v179 = vcombine.high %v65, %v66
    %v181 = vunpack.c.l.s4 1966171168
    %v182 = vunpack.c.0.s8 %v181
    %v183 = vlaneseq
    %v184 = vshrl.u32 %v183, 7
    %v185 = vsub.s32 %v182, %v184
    %v186 = vrot.slane %v176, %v185
    %v188 = vunpack.c.l.s4 1966171168
    %v189 = vunpack.c.0.s8 %v188
    %v190 = vlaneseq
    %v191 = vshrl.u32 %v190, 7
    %v192 = vsub.s32 %v189, %v191
    %v193 = vrot.slane %v177, %v192
    %v195 = vunpack.c.l.s4 1966171168
    %v196 = vunpack.c.0.s8 %v195
    %v197 = vlaneseq
    %v198 = vshrl.u32 %v197, 7
    %v199 = vsub.s32 %v196, %v198
    %v200 = vrot.slane %v178, %v199
    %v202 = vunpack.c.l.s4 1966171168
    %v203 = vunpack.c.0.s8 %v202
    %v204 = vlaneseq
    %v205 = vshrl.u32 %v204, 7
    %v206 = vsub.s32 %v203, %v205
    %v207 = vrot.slane %v179, %v206
    %v208 = vcombine.low %v186, %v200
    %v209 = vcombine.high %v186, %v200
    %v210 = vcombine.low %v193, %v207
    %v211 = vcombine.high %v193, %v207
    %v213 = vunpack.c.l.s4 1966171168
    %v214 = vunpack.c.0.s8 %v213
    %v215 = vlaneseq
    %v216 = vshrl.u32 %v215, 7
    %v217 = vsub.s32 %v214, %v216
    %v218 = vrot.slane %v208, %v217
    %v220 = vunpack.c.l.s4 1966171168
    %v221 = vunpack.c.0.s8 %v220
    %v222 = vlaneseq
    %v223 = vshrl.u32 %v222, 7
    %v224 = vsub.s32 %v221, %v223
    %v225 = vrot.slane %v210, %v224
    %v227 = vunpack.c.l.s4 1966171168
    %v228 = vunpack.c.0.s8 %v227
    %v229 = vlaneseq
    %v230 = vshrl.u32 %v229, 7
    %v231 = vsub.s32 %v228, %v230
    %v232 = vrot.slane %v209, %v231
    %v234 = vunpack.c.l.s4 1966171168
    %v235 = vunpack.c.0.s8 %v234
    %v236 = vlaneseq
    %v237 = vshrl.u32 %v236, 7
    %v238 = vsub.s32 %v235, %v237
    %v239 = vrot.slane %v211, %v238
    %v240 = vcombine.high %v218, %v218
    %v241 = vcombine.high %v225, %v225
    %v242 = vcombine.high %v232, %v232
    %v347 = vunpack.c.l.b16 %v67
    %v348 = vunpack.c.l.b16 %v68
    %v349 = vunpack.c.l.b16 %v69
    %v350 = vunpack.c.l.b16 %v70
    %v351 = vunpack.c.l.b16 %v71
    %v352 = vunpack.c.l.b16 %v72
    %v353 = vunpack.c.l.b16 %v73
    %v354 = vunpack.c.l.b16 %v74
    %v355 = vunpack.c.l.b16 %v75
    %v356 = vunpack.c.l.b16 %v76
    %v357 = vunpack.c.l.b16 %v77
    %v358 = vunpack.c.l.b16 %v78
    %v359 = vunpack.c.l.b16 %v79
    %v360 = vunpack.c.l.b16 %v80
    %v361 = vunpack.c.l.b16 %v81
    %v362 = vunpack.c.l.b16 %v82
    %v363 = vunpack.c.l.b16 %v83
    %v364 = vunpack.c.l.b16 %v84
    %v365 = vunpack.c.l.b16 %v85
    %v366 = vunpack.c.l.b16 %v86
    %v367 = vunpack.c.l.b16 %v87
    %v368 = vunpack.c.l.b16 %v88
    %v369 = vunpack.c.l.b16 %v89
    %v370 = vunpack.c.l.b16 %v90
    %v371 = vunpack.c.l.b16 %v91
    %v372 = vunpack.c.l.b16 %v92
    %v373 = vunpack.c.l.b16 %v93
    %v374 = vunpack.c.l.b16 %v94
    %v375 = vunpack.c.l.b16 %v95
    %v376 = vunpack.c.l.b16 %v96
    %v377 = vunpack.c.l.b16 %v97
    %v378 = vunpack.c.l.b16 %v98
    %v379 = vunpack.c.l.b16 %v99
    %v380 = vunpack.c.l.b16 %v100
    %v381 = vunpack.c.l.b16 %v101
    %v382 = vunpack.c.l.b16 %v102
    %v383 = vunpack.c.l.b16 %v103
    %v384 = vunpack.c.l.b16 %v104
    %v385 = vunpack.c.l.b16 %v105
    %v386 = vunpack.c.l.b16 %v106
    %v387 = vunpack.c.l.b16 %v107
    %v388 = vunpack.c.l.b16 %v108
    %v389 = vunpack.c.l.b16 %v109
    %v390 = vunpack.c.l.b16 %v110
    %v391 = vunpack.c.l.b16 %v111
    %v392 = vunpack.c.l.b16 %v112
    %v393 = vunpack.c.l.b16 %v113
    %v394 = vunpack.c.l.b16 %v114
    %v395 = vunpack.c.l.b16 %v115
    %v396 = vunpack.c.l.b16 %v116
    %v397 = vunpack.c.l.b16 %v117
    %v398 = vunpack.c.l.b16 %v118
    %v399 = vunpack.c.l.b16 %v119
    %v400 = vunpack.c.l.b16 %v120
    %v401 = vunpack.c.l.b16 %v121
    %v402 = vunpack.c.l.b16 %v122
    %v403 = vunpack.c.l.b16 %v123
    %v404 = vunpack.c.l.b16 %v124
    %v405 = vunpack.c.l.b16 %v125
    %v406 = vunpack.c.l.b16 %v126
    %v407 = vunpack.c.l.b16 %v127
    %v408 = vunpack.c.l.b16 %v128
    %v409 = vunpack.c.l.b16 %v129
    %v410 = vunpack.c.l.b16 %v130
    %v411 = vunpack.c.l.b16 %v131
    %v412 = vunpack.c.l.b16 %v132
    %v413 = vunpack.c.l.b16 %v133
    %v414 = vunpack.c.l.b16 %v134
    %v415 = vunpack.c.l.b16 %v135
    %v416 = vunpack.c.l.b16 %v136
    %v417 = vunpack.c.l.b16 %v137
    %v418 = vunpack.c.l.b16 %v138
    %v419 = vunpack.c.l.b16 %v139
    %v420 = vunpack.c.l.b16 %v140
    %v421 = vunpack.c.l.b16 %v141
    %v422 = vunpack.c.l.b16 %v142
    %v423 = vunpack.c.l.b16 %v143
    %v424 = vunpack.c.l.b16 %v144
    %v425 = vunpack.c.l.b16 %v145
    %v426 = vunpack.c.l.b16 %v146
    %v427 = vunpack.c.l.b16 %v147
    %v428 = vunpack.c.l.b16 %v148
    %v429 = vunpack.c.l.b16 %v149
    %v430 = vunpack.c.l.b16 %v150
    %v431 = vunpack.c.l.b16 %v151
    %v432 = vunpack.c.l.b16 %v152
    %v433 = vunpack.c.l.b16 %v153
    %v434 = vunpack.c.l.b16 %v154
    %v435 = vunpack.c.l.b16 %v155
    %v436 = vunpack.c.l.b16 %v156
    %v437 = vunpack.c.l.b16 %v157
    %v438 = vunpack.c.l.b16 %v158
    %v439 = vunpack.c.l.b16 %v159
    %v440 = vunpack.c.l.b16 %v160
    %v441 = vunpack.c.l.b16 %v161
    %v442 = vunpack.c.l.b16 %v162
    %v443 = vunpack.c.l.b16 %v163
    %v444 = vunpack.c.l.b16 %v164
    %v445 = vpack.c.b16 %v348, %v347
    %v446 = vpack.c.b16 %v350, %v349
    %v447 = vpack.c.b16 %v352, %v351
    %v448 = vpack.c.b16 %v354, %v353
    %v449 = vpack.c.b16 %v356, %v355
    %v450 = vpack.c.b16 %v358, %v357
    %v451 = vpack.c.b16 %v360, %v359
    %v452 = vpack.c.b16 %v362, %v361
    %v453 = vpack.c.b16 %v364, %v363
    %v454 = vpack.c.b16 %v366, %v365
    %v455 = vpack.c.b16 %v368, %v367
    %v456 = vpack.c.b16 %v370, %v369
    %v457 = vpack.c.b16 %v372, %v371
    %v458 = vpack.c.b16 %v374, %v373
    %v459 = vpack.c.b16 %v376, %v375
    %v460 = vpack.c.b16 %v378, %v377
    %v461 = vpack.c.b16 %v380, %v379
    %v462 = vpack.c.b16 %v382, %v381
    %v463 = vpack.c.b16 %v384, %v383
    %v464 = vpack.c.b16 %v386, %v385
    %v465 = vpack.c.b16 %v388, %v387
    %v466 = vpack.c.b16 %v390, %v389
    %v467 = vpack.c.b16 %v392, %v391
    %v468 = vpack.c.b16 %v394, %v393
    %v469 = vpack.c.b16 %v396, %v395
    %v470 = vpack.c.b16 %v398, %v397
    %v471 = vpack.c.b16 %v400, %v399
    %v472 = vpack.c.b16 %v402, %v401
    %v473 = vpack.c.b16 %v404, %v403
    %v474 = vpack.c.b16 %v406, %v405
    %v475 = vpack.c.b16 %v408, %v407
    %v476 = vpack.c.b16 %v410, %v409
    %v477 = vpack.c.b16 %v412, %v411
    %v478 = vpack.c.b16 %v414, %v413
    %v479 = vpack.c.b16 %v416, %v415
    %v480 = vpack.c.b16 %v418, %v417
    %v481 = vpack.c.b16 %v420, %v419
    %v482 = vpack.c.b16 %v422, %v421
    %v483 = vpack.c.b16 %v424, %v423
    %v484 = vpack.c.b16 %v426, %v425
    %v485 = vpack.c.b16 %v428, %v427
    %v486 = vpack.c.b16 %v430, %v429
    %v487 = vpack.c.b16 %v432, %v431
    %v488 = vpack.c.b16 %v434, %v433
    %v489 = vpack.c.b16 %v436, %v435
    %v490 = vpack.c.b16 %v438, %v437
    %v491 = vpack.c.b16 %v440, %v439
    %v492 = vpack.c.b16 %v442, %v441
    %v493 = vpack.c.b16 %v444, %v443
    %vm543 = vcmask 130048
    %v545 = vsel %vm543, %v241, 0
    %547 = vmatprep.subr.bf16.mxu0 0
    %548 = vmatpush1.bf16.msra.mxu0 %v445
    %549 = vmatprep.subr.bf16.mxu0 0
    %550 = vmatpush1.bf16.msra.mxu0 %v446
    %551 = vmatprep.subr.bf16.mxu0 0
    %552 = vmatpush1.bf16.msra.mxu0 %v447
    %553 = vmatprep.subr.bf16.mxu0 0
    %554 = vmatpush1.bf16.msra.mxu0 %v448
    %555 = vmatprep.subr.bf16.mxu0 0
    %556 = vmatpush1.bf16.msra.mxu0 %v449
    %557 = vmatprep.subr.bf16.mxu0 0
    %558 = vmatpush1.bf16.msra.mxu0 %v450
    %559 = vmatprep.subr.bf16.mxu0 0
    %560 = vmatpush1.bf16.msra.mxu0 %v451
    %561 = vmatprep.subr.bf16.mxu0 0
    %562 = vmatpush1.bf16.msra.mxu0 %v452
    %563 = vmatprep.subr.bf16.mxu0 0
    %564 = vmatpush1.bf16.msra.mxu0 %v453
    %565 = vmatprep.subr.bf16.mxu0 0
    %566 = vmatpush1.bf16.msra.mxu0 %v454
    %567 = vmatprep.subr.bf16.mxu0 0
    %568 = vmatpush1.bf16.msra.mxu0 %v455
    %569 = vmatprep.subr.bf16.mxu0 0
    %570 = vmatpush1.bf16.msra.mxu0 %v456
    %571 = vmatprep.subr.bf16.mxu0 0
    %572 = vmatpush1.bf16.msra.mxu0 %v457
    %573 = vmatprep.subr.bf16.mxu0 0
    %574 = vmatpush1.bf16.msra.mxu0 %v458
    %575 = vmatprep.subr.bf16.mxu0 0
    %576 = vmatpush1.bf16.msra.mxu0 %v459
    %577 = vmatprep.subr.bf16.mxu0 0
    %578 = vmatpush1.bf16.msra.mxu0 %v460
    %579 = vmatprep.mubr.bf16.mxu0 %v232
    %580 = vmatmul.mubr.bf16.gmra.mrb[0].mxu0 %v218
    %v581 = vpop.f32.mrb[0].mxu0
    %v582 = vadd.f32 %v170, %v581
    %v583 = vpop.f32.mrb[0].mxu0
    %v584 = vpop.f32.mrb[0].mxu0
    %v585 = vpop.f32.mrb[0].mxu0
    %586 = vdwg.mxu0
    %587 = vmatprep.subr.bf16.mxu0 0
    %588 = vmatpush1.bf16.msra.mxu0 %v461
    %589 = vmatprep.subr.bf16.mxu0 0
    %590 = vmatpush1.bf16.msra.mxu0 %v462
    %591 = vmatprep.subr.bf16.mxu0 0
    %592 = vmatpush1.bf16.msra.mxu0 %v463
    %593 = vmatprep.subr.bf16.mxu0 0
    %594 = vmatpush1.bf16.msra.mxu0 %v464
    %595 = vmatprep.subr.bf16.mxu0 0
    %596 = vmatpush1.bf16.msra.mxu0 %v465
    %597 = vmatprep.subr.bf16.mxu0 0
    %598 = vmatpush1.bf16.msra.mxu0 %v466
    %599 = vmatprep.subr.bf16.mxu0 0
    %600 = vmatpush1.bf16.msra.mxu0 %v467
    %601 = vmatprep.subr.bf16.mxu0 0
    %602 = vmatpush1.bf16.msra.mxu0 %v468
    %603 = vmatprep.subr.bf16.mxu0 0
    %604 = vmatpush1.bf16.msra.mxu0 %v469
    %605 = vmatprep.subr.bf16.mxu0 0
    %606 = vmatpush1.bf16.msra.mxu0 %v470
    %607 = vmatprep.subr.bf16.mxu0 0
    %608 = vmatpush1.bf16.msra.mxu0 %v471
    %609 = vmatprep.subr.bf16.mxu0 0
    %610 = vmatpush1.bf16.msra.mxu0 %v472
    %611 = vmatprep.subr.bf16.mxu0 0
    %612 = vmatpush1.bf16.msra.mxu0 %v473
    %613 = vmatprep.subr.bf16.mxu0 0
    %614 = vmatpush1.bf16.msra.mxu0 %v474
    %615 = vmatprep.subr.bf16.mxu0 0
    %616 = vmatpush1.bf16.msra.mxu0 %v475
    %617 = vmatprep.subr.bf16.mxu0 0
    %618 = vmatpush1.bf16.msra.mxu0 %v476
    %619 = vmatprep.mubr.bf16.mxu0 %v242
    %620 = vmatmul.mubr.bf16.gmra.mrb[0].mxu0 %v240
    %v621 = vpop.f32.mrb[0].mxu0
    %v622 = vadd.f32 %v582, %v621
    %v623 = vpop.f32.mrb[0].mxu0
    %v624 = vpop.f32.mrb[0].mxu0
    %v625 = vpop.f32.mrb[0].mxu0
    %626 = vdwg.mxu0
    %627 = vmatprep.subr.bf16.mxu0 0
    %628 = vmatpush1.bf16.msra.mxu0 %v477
    %629 = vmatprep.subr.bf16.mxu0 0
    %630 = vmatpush1.bf16.msra.mxu0 %v478
    %631 = vmatprep.subr.bf16.mxu0 0
    %632 = vmatpush1.bf16.msra.mxu0 %v479
    %633 = vmatprep.subr.bf16.mxu0 0
    %634 = vmatpush1.bf16.msra.mxu0 %v480
    %635 = vmatprep.subr.bf16.mxu0 0
    %636 = vmatpush1.bf16.msra.mxu0 %v481
    %637 = vmatprep.subr.bf16.mxu0 0
    %638 = vmatpush1.bf16.msra.mxu0 %v482
    %639 = vmatprep.subr.bf16.mxu0 0
    %640 = vmatpush1.bf16.msra.mxu0 %v483
    %641 = vmatprep.subr.bf16.mxu0 0
    %642 = vmatpush1.bf16.msra.mxu0 %v484
    %643 = vmatprep.subr.bf16.mxu0 0
    %644 = vmatpush1.bf16.msra.mxu0 %v485
    %645 = vmatprep.subr.bf16.mxu0 0
    %646 = vmatpush1.bf16.msra.mxu0 %v486
    %647 = vmatprep.subr.bf16.mxu0 0
    %648 = vmatpush1.bf16.msra.mxu0 %v487
    %649 = vmatprep.subr.bf16.mxu0 0
    %650 = vmatpush1.bf16.msra.mxu0 %v488
    %651 = vmatprep.subr.bf16.mxu0 0
    %652 = vmatpush1.bf16.msra.mxu0 %v489
    %653 = vmatprep.subr.bf16.mxu0 0
    %654 = vmatpush1.bf16.msra.mxu0 %v490
    %655 = vmatprep.subr.bf16.mxu0 0
    %656 = vmatpush1.bf16.msra.mxu0 %v491
    %657 = vmatprep.subr.bf16.mxu0 0
    %658 = vmatpush1.bf16.msra.mxu0 %v492
    %659 = vmatprep.mubr.bf16.mxu0 %v239
    %660 = vmatmul.mubr.bf16.gmra.mrb[0].mxu0 %v225
    %v661 = vpop.f32.mrb[0].mxu0
    %v662 = vadd.f32 %v622, %v661
    %v663 = vpop.f32.mrb[0].mxu0
    %v664 = vpop.f32.mrb[0].mxu0
    %v665 = vpop.f32.mrb[0].mxu0
    %666 = vdwg.mxu0
    %667 = vmatprep.subr.bf16.mxu0 0
    %668 = vmatpush1.bf16.msra.mxu0 %v493
    %669 = vmatprep.subr.bf16.mxu0 0
    %670 = vmatpush1.bf16.msra.mxu0 0
    %671 = vmatprep.subr.bf16.mxu0 0
    %672 = vmatpush1.bf16.msra.mxu0 0
    %673 = vmatprep.subr.bf16.mxu0 0
    %674 = vmatpush1.bf16.msra.mxu0 0
    %675 = vmatprep.subr.bf16.mxu0 0
    %676 = vmatpush1.bf16.msra.mxu0 0
    %677 = vmatprep.subr.bf16.mxu0 0
    %678 = vmatpush1.bf16.msra.mxu0 0
    %679 = vmatprep.subr.bf16.mxu0 0
    %680 = vmatpush1.bf16.msra.mxu0 0
    %681 = vmatprep.subr.bf16.mxu0 0
    %682 = vmatpush1.bf16.msra.mxu0 0
    %683 = vmatprep.subr.bf16.mxu0 0
    %684 = vmatpush1.bf16.msra.mxu0 0
    %685 = vmatprep.subr.bf16.mxu0 0
    %686 = vmatpush1.bf16.msra.mxu0 0
    %687 = vmatprep.subr.bf16.mxu0 0
    %688 = vmatpush1.bf16.msra.mxu0 0
    %689 = vmatprep.subr.bf16.mxu0 0
    %690 = vmatpush1.bf16.msra.mxu0 0
    %691 = vmatprep.subr.bf16.mxu0 0
    %692 = vmatpush1.bf16.msra.mxu0 0
    %693 = vmatprep.subr.bf16.mxu0 0
    %694 = vmatpush1.bf16.msra.mxu0 0
    %695 = vmatprep.subr.bf16.mxu0 0
    %696 = vmatpush1.bf16.msra.mxu0 0
    %697 = vmatprep.subr.bf16.mxu0 0
    %698 = vmatpush1.bf16.msra.mxu0 0
    %699 = vmatprep.mubr.bf16.mxu0 0
    %700 = vmatmul.mubr.bf16.gmra.mrb[0].mxu0 %v545
    %v701 = vpop.f32.mrb[0].mxu0
    %v702 = vadd.f32 %v662, %v701
    %v703 = vpop.f32.mrb[0].mxu0
    %v704 = vpop.f32.mrb[0].mxu0
    %v705 = vpop.f32.mrb[0].mxu0
    %706 = vdwg.mxu0
    %v707 = vmax.f32 %v702, 0.0
    %v708 = vpack.c.bf16 %v707, %v707
    %v709 = vld [vmem:[#allocation7] sm:$0xf]
    %v710 = vld [vmem:[#allocation7 + $0x4] sm:$0xf]
    %v711 = vld [vmem:[#allocation7 + $0x8] sm:$0xf]
    %v712 = vld [vmem:[#allocation7 + $0xc] sm:$0xf]
    %v713 = vld [vmem:[#allocation7 + $0x10] sm:$0xf]
    %v714 = vld [vmem:[#allocation7 + $0x14] sm:$0xf]
    %v715 = vld [vmem:[#allocation7 + $0x18] sm:$0xf]
    %v716 = vld [vmem:[#allocation7 + $0x1c] sm:$0xf]
    %v717 = vld [vmem:[#allocation7 + $0x20] sm:$0xf]
    %v718 = vld [vmem:[#allocation7 + $0x24] sm:$0xf]
    %v719 = vld [vmem:[#allocation7 + $0x28] sm:$0xf]
    %v720 = vld [vmem:[#allocation7 + $0x2c] sm:$0xf]
    %v721 = vld [vmem:[#allocation7 + $0x30] sm:$0xf]
    %v722 = vld [vmem:[#allocation7 + $0x34] sm:$0xf]
    %v723 = vld [vmem:[#allocation7 + $0x38] sm:$0xf]
    %v724 = vld [vmem:[#allocation7 + $0x3c] sm:$0xf]
    %v725 = vld [vmem:[%s4] sm:$0x1]
    %v727 = vlaneseq
    %v728 = vshrl.u32 %v727, 7
    %v729 = vsub.s32 0, %v728
    %v730 = vrot.slane %v725, %v729
    %v748 = vunpack.c.l.b16 %v709
    %v749 = vunpack.c.l.b16 %v710
    %v750 = vunpack.c.l.b16 %v711
    %v751 = vunpack.c.l.b16 %v712
    %v752 = vunpack.c.l.b16 %v713
    %v753 = vunpack.c.l.b16 %v714
    %v754 = vunpack.c.l.b16 %v715
    %v755 = vunpack.c.l.b16 %v716
    %v756 = vunpack.c.l.b16 %v717
    %v757 = vunpack.c.l.b16 %v718
    %v758 = vunpack.c.l.b16 %v719
    %v759 = vunpack.c.l.b16 %v720
    %v760 = vunpack.c.l.b16 %v721
    %v761 = vunpack.c.l.b16 %v722
    %v762 = vunpack.c.l.b16 %v723
    %v763 = vunpack.c.l.b16 %v724
    %v764 = vpack.c.b16 %v749, %v748
    %v765 = vpack.c.b16 %v751, %v750
    %v766 = vpack.c.b16 %v753, %v752
    %v767 = vpack.c.b16 %v755, %v754
    %v768 = vpack.c.b16 %v757, %v756
    %v769 = vpack.c.b16 %v759, %v758
    %v770 = vpack.c.b16 %v761, %v760
    %v771 = vpack.c.b16 %v763, %v762
    %780 = vmatprep.subr.bf16.mxu0 0
    %781 = vmatpush1.bf16.msra.mxu0 %v764
    %782 = vmatprep.subr.bf16.mxu0 0
    %783 = vmatpush1.bf16.msra.mxu0 %v765
    %784 = vmatprep.subr.bf16.mxu0 0
    %785 = vmatpush1.bf16.msra.mxu0 %v766
    %786 = vmatprep.subr.bf16.mxu0 0
    %787 = vmatpush1.bf16.msra.mxu0 %v767
    %788 = vmatprep.subr.bf16.mxu0 0
    %789 = vmatpush1.bf16.msra.mxu0 %v768
    %790 = vmatprep.subr.bf16.mxu0 0
    %791 = vmatpush1.bf16.msra.mxu0 %v769
    %792 = vmatprep.subr.bf16.mxu0 0
    %793 = vmatpush1.bf16.msra.mxu0 %v770
    %794 = vmatprep.subr.bf16.mxu0 0
    %795 = vmatpush1.bf16.msra.mxu0 %v771
    %796 = vmatprep.subr.bf16.mxu0 0
    %797 = vmatpush1.bf16.msra.mxu0 0
    %798 = vmatprep.subr.bf16.mxu0 0
    %799 = vmatpush1.bf16.msra.mxu0 0
    %800 = vmatprep.subr.bf16.mxu0 0
    %801 = vmatpush1.bf16.msra.mxu0 0
    %802 = vmatprep.subr.bf16.mxu0 0
    %803 = vmatpush1.bf16.msra.mxu0 0
    %804 = vmatprep.subr.bf16.mxu0 0
    %805 = vmatpush1.bf16.msra.mxu0 0
    %806 = vmatprep.subr.bf16.mxu0 0
    %807 = vmatpush1.bf16.msra.mxu0 0
    %808 = vmatprep.subr.bf16.mxu0 0
    %809 = vmatpush1.bf16.msra.mxu0 0
    %810 = vmatprep.subr.bf16.mxu0 0
    %811 = vmatpush1.bf16.msra.mxu0 0
    %812 = vmatprep.mubr.bf16.mxu0 0
    %813 = vmatmul.mubr.bf16.gmra.mrb[0].mxu0 %v708
    %v814 = vpop.f32.mrb[0].mxu0
    %v815 = vadd.f32 %v730, %v814
    %v816 = vpop.f32.mrb[0].mxu0
    %v817 = vpop.f32.mrb[0].mxu0
    %v818 = vpop.f32.mrb[0].mxu0
    %819 = vdwg.mxu0
    %820 = vst [vmem:[#allocation8] sm:$0xff] %v815
    // Predicated region
    $region34: #{tpu_custom_call.1} parent=1 // pred_check
      _
    $region35: #{tpu_custom_call.1} parent=1 // pred_check_branch
      %822 = sbr.rel (0) target = $region37
    $region36: #{tpu_custom_call.1} parent=1 // pred_region
      %s824 = ssub.s32 128, 32
      %825 = vsyncadd [#allocation4], %s824
      %s826 = sshll.u32 [#allocation8], 4
      %s827 = int_to_ptr.vmem [resolvable:$true] %s826
      %832 = dma.vmem_to_hbm [thread:$0]  %s827, 32, %s5, [#allocation4], 32, 32, 2
    $region37: #{tpu_custom_call.1} parent=1 // pred_fallthru
      _
    // Predicated region
    $region38: #{tpu_custom_call.1} parent=1 // pred_check
      _
    $region39: #{tpu_custom_call.1} parent=1 // pred_check_branch
      %834 = sbr.rel (0) target = $region41
    $region40: #{tpu_custom_call.1} parent=1 // pred_region
      %835 = dma.done [#allocation4], 128
    $region41: #{tpu_custom_call.1} parent=1 // pred_fallthru
      _
    %836 = vsyncpa [#allocation3], 1
    %837 = vsyncpa [#allocation6], 1
    %838 = vsyncpa [#allocation4], 1

</llo_original>
